<compile_context>
chip_gen: v6e
topology: v6e:2x2x1
jax: 0.10.0
libtpu: 0.0.40
codegen_flags: <defaults>
</compile_context>

<pallas_src>
import functools

import numpy as np
import jax
import jax.numpy as jnp
from jax import lax
from jax.experimental import pallas as pl
from jax.experimental.pallas import tpu as pltpu


def _round_up(x, m):
    return ((x + m - 1) // m) * m


def _ntxent_kernel(reps_ref, reps_t_ref, bias_ref, loss_ref, *, batch_size, b_pad):
    """reps_ref: [N_pad, D] resident; reps_t_ref: [D, N_pad] resident (MXU RHS);
    bias_ref: [1, N_pad] pad-column bias; loss_ref: [TB, 1] per-row losses."""
    tb = loss_ref.shape[0]
    n_pad = reps_t_ref.shape[1]
    align = tb & -tb  # largest power-of-two divisor of tb (alignment hint)

    row0 = pl.multiple_of(pl.program_id(0) * tb, align)
    # Row block sliced from the resident operand (no second HBM stream).
    rows = reps_ref[pl.ds(row0, tb), :]                      # [TB, D], carries 1/sqrt(T)

    # sim/T = rows @ R^T, with the RHS already in native [K, N] layout.
    sim = lax.dot_general(
        rows, reps_t_ref[...],
        dimension_numbers=(((1,), (0,)), ((), ())),
        preferred_element_type=jnp.float32,
    )                                                        # [TB, N_pad] f32

    # Masking: padded columns via the resident bias row (one add), self column via
    # a single compare+select.  Only (TB,1)/(1,N) iotas are materialized.
    row_ids = row0 + lax.broadcasted_iota(jnp.int32, (tb, 1), 0)
    col_ids = lax.broadcasted_iota(jnp.int32, (1, n_pad), 1)
    masked = jnp.where(col_ids == row_ids, jnp.float32(-1e30), sim + bias_ref[...])

    m = jnp.max(masked, axis=1, keepdims=True)               # [TB, 1]
    denom = jnp.sum(jnp.exp(masked - m), axis=1, keepdims=True)
    lse = m + jnp.log(denom)                                 # logsumexp over c != r

    # Positive = <row, partner row>, O(TB*D).  Each half is padded to a multiple of
    # TB, so the partner block is one contiguous, aligned sublane slice.
    in_first_half = row0 < b_pad
    partner0 = pl.multiple_of(
        jnp.where(in_first_half, row0 + b_pad, row0 - b_pad), align)
    partner = reps_ref[pl.ds(partner0, tb), :]               # [TB, D]
    pos = jnp.sum(rows.astype(jnp.float32) * partner.astype(jnp.float32),
                  axis=1, keepdims=True)                     # already includes 1/T

    # Zero padded rows so the wrapper can simply sum the output.
    local_row = row_ids - jnp.where(in_first_half, 0, b_pad)
    loss_ref[...] = jnp.where(local_row < batch_size, lse - pos, 0.0)


def ntxent_loss(zis, zjs, *, temperature=0.5, use_cosine_similarity=True,
                block_rows=256):
    """NT-Xent loss. zis, zjs: [B, D] projections of the two augmented views."""
    assert zis.ndim == 2 and zis.shape == zjs.shape
    batch_size, d = zis.shape

    reps = jnp.concatenate([zjs, zis], axis=0)                        # [2B, D]
    if use_cosine_similarity:
        r32 = reps.astype(jnp.float32)
        norm = jnp.sqrt(jnp.sum(r32 * r32, axis=1, keepdims=True))
        reps = (r32 / jnp.maximum(norm, 1e-12)).astype(reps.dtype)
        # TODO(synk): torch.nn.CosineSimilarity clamps the pairwise norm *product*
        # with eps=1e-8; per-row normalization differs only for (near-)zero vectors.

    # Fold the temperature into the data once: both matmul operands carry 1/sqrt(T),
    # so sim and the positive dot already include the 1/T factor.
    scale = 1.0 / float(np.sqrt(float(temperature)))
    reps = (reps.astype(jnp.float32) * scale).astype(reps.dtype)

    # dtype-aware sublane alignment for the row block (f32:8, bf16:16, int8/fp8:32).
    itemsize = jnp.dtype(reps.dtype).itemsize
    align = {4: 8, 2: 16, 1: 32}.get(itemsize, 8)
    tb = max(align, min(block_rows, _round_up(batch_size, align)))
    tb = _round_up(tb, align)

    # Pad each half independently to a multiple of tb: row blocks never straddle the
    # half boundary, so the positive-partner block is a single contiguous slice.
    b_pad = _round_up(batch_size, tb)
    n_pad = 2 * b_pad
    pad = ((0, b_pad - batch_size), (0, 0))
    reps_p = jnp.concatenate(
        [jnp.pad(reps[:batch_size], pad), jnp.pad(reps[batch_size:], pad)], axis=0)
    reps_t = jnp.transpose(reps_p)                                     # [D, n_pad], once

    # Column bias: 0 for valid columns, -1e30 for padding columns.
    col = np.arange(n_pad)
    local = np.where(col < b_pad, col, col - b_pad)
    col_bias = jnp.asarray(
        np.where(local < batch_size, 0.0, -1e30).astype(np.float32).reshape(1, n_pad))

    # Generation-aware VMEM budget (v5e/v6e: 128 MiB, v7x: 64 MiB per TensorCore).
    try:
        vmem_cap = int(pltpu.get_tpu_info().vmem_capacity_bytes)
    except Exception:
        vmem_cap = 64 * 1024 * 1024
    vmem_limit = max(32 * 1024 * 1024, min((vmem_cap * 3) // 4, 112 * 1024 * 1024))

    kernel = functools.partial(_ntxent_kernel, batch_size=batch_size, b_pad=b_pad)

    per_row = pl.pallas_call(
        kernel,
        out_shape=jax.ShapeDtypeStruct((n_pad, 1), jnp.float32),
        grid_spec=pltpu.PrefetchScalarGridSpec(
            num_scalar_prefetch=0,
            grid=(n_pad // tb,),
            in_specs=[
                # Residents (constant index_map -> DMA'd once, not re-streamed):
                pl.BlockSpec((n_pad, d), lambda i: (0, 0)),    # contrast rows [N,D]
                pl.BlockSpec((d, n_pad), lambda i: (0, 0)),    # MXU-native RHS [K,N]
                pl.BlockSpec((1, n_pad), lambda i: (0, 0)),    # pad-column bias
            ],
            out_specs=pl.BlockSpec((tb, 1), lambda i: (i, 0)),
        ),
        compiler_params=pltpu.CompilerParams(
            dimension_semantics=("parallel",),                 # megacore split on v7x
            vmem_limit_bytes=int(vmem_limit),
        ),
    )(reps_p, reps_t, col_bias)

    # TODO(synk): for very large N (>= ~8k) on v7x (64 MiB VMEM), add a second
    # "arbitrary" grid axis over column blocks with an online (flash-style)
    # logsumexp instead of materializing a full [tb, n_pad] row of sim.
    return jnp.sum(per_row) / (2 * batch_size)


def _reference_numpy(zis, zjs, temperature, use_cosine):
    """Literal numpy translation of the PyTorch NTXentLoss forward."""
    zis = np.asarray(zis, np.float32)
    zjs = np.asarray(zjs, np.float32)
    b = zis.shape[0]
    n = 2 * b
    reps = np.concatenate([zjs, zis], axis=0)
    if use_cosine:
        nrm = np.linalg.norm(reps, axis=1, keepdims=True)
        reps_n = reps / np.maximum(nrm, 1e-12)
        sim = reps_n @ reps_n.T
    else:
        sim = reps @ reps.T
    l_pos = np.diag(sim, k=b)
    r_pos = np.diag(sim, k=-b)
    positives = np.concatenate([l_pos, r_pos]).reshape(n, 1)
    mask = (1 - (np.eye(n) + np.eye(n, k=b) + np.eye(n, k=-b))).astype(bool)
    negatives = sim[mask].reshape(n, -1)
    logits = np.concatenate([positives, negatives], axis=1) / temperature
    m = logits.max(axis=1, keepdims=True)
    lse = m[:, 0] + np.log(np.exp(logits - m).sum(axis=1))
    loss = np.sum(lse - logits[:, 0])  # CrossEntropy(reduction='sum'), labels == 0
    return loss / n


if __name__ == "__main__":
    key = jax.random.PRNGKey(0)
    # batch=21 (2B=42 rows), feature dim 32; block_rows=16 exercises multi-block
    # grid + per-half padding, block_rows=256 exercises one block per half.
    batch_size, feat_dim = 21, 32
    temperature = 0.5
    k1, k2 = jax.random.split(key)
    zis = jax.random.normal(k1, (batch_size, feat_dim), dtype=jnp.float32)
    zjs = jax.random.normal(k2, (batch_size, feat_dim), dtype=jnp.float32)

    for use_cos in (True, False):
        for br in (16, 256):
            loss = ntxent_loss(zis, zjs, temperature=temperature,
                               use_cosine_similarity=use_cos, block_rows=br)
            loss = jax.block_until_ready(loss)
            ref = _reference_numpy(zis, zjs, temperature, use_cos)
            assert np.isfinite(float(loss)), ("non-finite loss", float(loss))
            assert np.allclose(float(loss), float(ref), rtol=1e-3, atol=1e-3), (
                use_cos, br, float(loss), float(ref))

    # bf16 inputs exercise the 16-row sublane alignment path (looser tolerance).
    loss_bf16 = ntxent_loss(zis.astype(jnp.bfloat16), zjs.astype(jnp.bfloat16),
                            temperature=temperature, use_cosine_similarity=True,
                            block_rows=16)
    loss_bf16 = jax.block_until_ready(loss_bf16)
    ref = _reference_numpy(zis, zjs, temperature, True)
    assert np.isfinite(float(loss_bf16))
    assert np.allclose(float(loss_bf16), float(ref), rtol=5e-2, atol=5e-2), (
        float(loss_bf16), float(ref))

    print("KERNEL_OK")
</pallas_src>

<mosaic_0001>
module attributes {stable_mosaic.version = 11 : i64} {
  func.func @_ntxent_kernel(%arg0: i32, %arg1: memref<64x32xf32, #tpu.memory_space<vmem>>, %arg2: memref<32x64xf32, #tpu.memory_space<vmem>>, %arg3: memref<1x64xf32, #tpu.memory_space<vmem>>, %arg4: memref<16x1xf32, #tpu.memory_space<vmem>>) attributes {dimension_semantics = [#tpu.dimension_semantics<parallel>], iteration_bounds = array<i64: 4>, scalar_prefetch = 0 : i64, scratch_operands = 0 : i64, tpu.core_type = #tpu.core_type<tc>, window_params = [{pipeline_mode = #tpu.pipeline_mode<synchronous>, transform_indices = @transform_0, window_bounds = array<i64: 64, 32>}, {pipeline_mode = #tpu.pipeline_mode<synchronous>, transform_indices = @transform_1, window_bounds = array<i64: 32, 64>}, {pipeline_mode = #tpu.pipeline_mode<synchronous>, transform_indices = @transform_2, window_bounds = array<i64: 1, 64>}, {transform_indices = @transform_3, window_bounds = array<i64: 16, 1>}]} {
    %c16_i32 = arith.constant 16 : i32
    %0 = arith.muli %arg0, %c16_i32 : i32
    %1 = tpu.assume_multiple %0, 16 : i32
    %2 = arith.index_cast %1 : i32 to index
    %c0 = arith.constant 0 : index
    %3 = vector.load %arg1[%2, %c0] : memref<64x32xf32, #tpu.memory_space<vmem>>, vector<16x32xf32>
    %c0_0 = arith.constant 0 : index
    %c0_1 = arith.constant 0 : index
    %4 = vector.load %arg2[%c0_0, %c0_1] : memref<32x64xf32, #tpu.memory_space<vmem>>, vector<32x64xf32>
    %cst = arith.constant dense<0.000000e+00> : vector<16x64xf32>
    %5 = tpu.matmul %3, %4, %cst {dimension_numbers = #tpu.dot_dimension_numbers<[1], [0], [0], [1], [0, 0, 1, 1], [], []>} : vector<16x32xf32>, vector<32x64xf32>, vector<16x64xf32> -> vector<16x64xf32>
    %6 = tpu.iota {dimensions = array<i32: 0>} : vector<16x1xi32>
    %7 = vector.broadcast %1 : i32 to vector<16x1xi32>
    %8 = arith.addi %7, %6 : vector<16x1xi32>
    %9 = tpu.iota {dimensions = array<i32: 1>} : vector<1x64xi32>
    %10 = vector.broadcast %9 : vector<1x64xi32> to vector<16x64xi32>
    %11 = vector.broadcast %8 : vector<16x1xi32> to vector<16x64xi32>
    %12 = arith.cmpi eq, %10, %11 : vector<16x64xi32>
    %c0_2 = arith.constant 0 : index
    %c0_3 = arith.constant 0 : index
    %13 = vector.load %arg3[%c0_2, %c0_3] : memref<1x64xf32, #tpu.memory_space<vmem>>, vector<1x64xf32>
    %14 = vector.broadcast %13 : vector<1x64xf32> to vector<16x64xf32>
    %15 = arith.addf %5, %14 : vector<16x64xf32>
    %cst_4 = arith.constant -1.000000e+30 : f32
    %16 = vector.broadcast %cst_4 : f32 to vector<16x64xf32>
    %17 = arith.select %12, %16, %15 : vector<16x64xi1>, vector<16x64xf32>
    %cst_5 = arith.constant dense<0xFF800000> : vector<16xf32>
    %18 = vector.multi_reduction <maximumf>, %17, %cst_5 [1] : vector<16x64xf32> to vector<16xf32>
    %19 = vector.shape_cast %18 : vector<16xf32> to vector<16x1xf32>
    %20 = vector.broadcast %19 : vector<16x1xf32> to vector<16x64xf32>
    %21 = arith.subf %17, %20 : vector<16x64xf32>
    %22 = math.exp %21 : vector<16x64xf32>
    %cst_6 = arith.constant dense<0.000000e+00> : vector<16xf32>
    %23 = vector.multi_reduction <add>, %22, %cst_6 [1] : vector<16x64xf32> to vector<16xf32>
    %24 = vector.shape_cast %23 : vector<16xf32> to vector<16x1xf32>
    %25 = math.log %24 : vector<16x1xf32>
    %26 = arith.addf %19, %25 : vector<16x1xf32>
    %c32_i32 = arith.constant 32 : i32
    %27 = arith.cmpi slt, %1, %c32_i32 : i32
    %c32_i32_7 = arith.constant 32 : i32
    %28 = arith.addi %1, %c32_i32_7 : i32
    %c32_i32_8 = arith.constant 32 : i32
    %29 = arith.subi %1, %c32_i32_8 : i32
    %30 = arith.select %27, %28, %29 : i32
    %31 = tpu.assume_multiple %30, 16 : i32
    %32 = arith.index_cast %31 : i32 to index
    %c0_9 = arith.constant 0 : index
    %33 = vector.load %arg1[%32, %c0_9] : memref<64x32xf32, #tpu.memory_space<vmem>>, vector<16x32xf32>
    %34 = arith.mulf %3, %33 : vector<16x32xf32>
    %cst_10 = arith.constant dense<0.000000e+00> : vector<16xf32>
    %35 = vector.multi_reduction <add>, %34, %cst_10 [1] : vector<16x32xf32> to vector<16xf32>
    %36 = vector.shape_cast %35 : vector<16xf32> to vector<16x1xf32>
    %c0_i32 = arith.constant 0 : i32
    %c32_i32_11 = arith.constant 32 : i32
    %37 = arith.select %27, %c0_i32, %c32_i32_11 : i32
    %38 = vector.broadcast %37 : i32 to vector<16x1xi32>
    %39 = arith.subi %8, %38 : vector<16x1xi32>
    %c21_i32 = arith.constant 21 : i32
    %40 = vector.broadcast %c21_i32 : i32 to vector<16x1xi32>
    %41 = arith.cmpi slt, %39, %40 : vector<16x1xi32>
    %42 = arith.subf %26, %36 : vector<16x1xf32>
    %cst_12 = arith.constant 0.000000e+00 : f32
    %43 = vector.broadcast %cst_12 : f32 to vector<16x1xf32>
    %44 = arith.select %41, %42, %43 : vector<16x1xi1>, vector<16x1xf32>
    %c0_13 = arith.constant 0 : index
    %c0_14 = arith.constant 0 : index
    %45 = vector.load %arg4[%c0_13, %c0_14] : memref<16x1xf32, #tpu.memory_space<vmem>>, vector<16x1xf32>
    tpu.vector_store %arg4[%c0_13, %c0_14], %44 {strides = array<i32>} : memref<16x1xf32, #tpu.memory_space<vmem>>, vector<16x1xf32>,
    return
  }
  func.func @transform_0(%arg0: i32) -> (i32, i32) {
    %c0_i32 = arith.constant 0 : i32
    %c0_i32_0 = arith.constant 0 : i32
    %c0_i32_1 = arith.constant 0 : i32
    return %c0_i32, %c0_i32_0 : i32, i32
  }
  func.func @transform_1(%arg0: i32) -> (i32, i32) {
    %c0_i32 = arith.constant 0 : i32
    %c0_i32_0 = arith.constant 0 : i32
    %c0_i32_1 = arith.constant 0 : i32
    return %c0_i32, %c0_i32_0 : i32, i32
  }
  func.func @transform_2(%arg0: i32) -> (i32, i32) {
    %c0_i32 = arith.constant 0 : i32
    %c0_i32_0 = arith.constant 0 : i32
    %c0_i32_1 = arith.constant 0 : i32
    return %c0_i32, %c0_i32_0 : i32, i32
  }
  func.func @transform_3(%arg0: i32) -> (i32, i32) {
    %c0_i32 = arith.constant 0 : i32
    %c0_i32_0 = arith.constant 0 : i32
    return %arg0, %c0_i32 : i32, i32
  }
}

</mosaic_0001>

<llo_original>
// kernel: tpu_custom_call.1
$region0: #{tpu_custom_call.1}
  #allocation0 [shape = 'u32[]', space=smem, size = 0x4, offset = 0x4, fixed_abs, tag = 'smem constant byte address 0x4 - core index']
  #allocation1 [shape = 'u32[144,128]{1,0:T(1,128)}', space=vmem, size = 0x12000, scoped, tag = 'internal scratch']
  %s0 = inlined_call_operand.vmem [shape: f32[64,32], index: 0, kind: input, shape index: {}]
  %s1 = inlined_call_operand.vmem [shape: f32[32,64], index: 1, kind: input, shape index: {}]
  %s2 = inlined_call_operand.vmem [shape: f32[1,64], index: 2, kind: input, shape index: {}]
  %s3 = inlined_call_operand.vmem [shape: f32[64,1], index: 3, kind: output, shape index: {}]
  %s4 = sld [smem:[#allocation0]]
  $region45: #{tpu_custom_call.1} parent=0
    _
  %s6 = ssub.s32 1, %s4
  %s7 = scalar_select 0, %s6, %s4
  loop: start=0, step=1, limit=6
  $region2: #{tpu_custom_call.1} parent=0 // loop_pre_header
    _
  $region3: #{tpu_custom_call.1} parent=0 // loop_header
    %s9 = sphi 0, %s13
    %p10 = scmp.ge.s32.totalorder %s9, 6
    %s17 = sphi 0, %s17
    %s19 = sphi 0, %s17
    %s20 = sphi 0, %s19
    %s34 = sphi 0, %s20
    %s38 = sphi 0, %s38
    %s40 = sphi 0, %s38
    %s41 = sphi 0, %s40
    %s55 = sphi 0, %s41
    %s59 = sphi 0, %s59
    %s61 = sphi 0, %s59
    %s62 = sphi 0, %s61
    %s76 = sphi 0, %s62
    %s82 = sphi 0, %s84
    %s85 = sphi 0, %s82
    %s86 = sphi 0, %s85
    %s102 = sphi 0, %s86
  $region4: #{tpu_custom_call.1} parent=0 // loop_header_branch
    %12 = sbr.rel (%p10) target = $region8
  $region5: #{tpu_custom_call.1} parent=0 // loop_body
    %s14 = ssub.s32 %s9, 1
    %s15 = ssub.s32 %s9, 2
    %s16 = sadd.s32 %s9, 1
    %s18 = sadd.s32 %s17, 1
    %p21 = scmp.eq.s32.totalorder %s9, 3
    %p22 = scmp.ne.s32.totalorder %s17, %s19
    %p23 = scmp.eq.s32.totalorder %s9, 0
    %p24 = por %p22, %p23
    %p25 = scmp.ne.s32.totalorder %s17, %s19
    %p26 = scmp.eq.s32.totalorder %s14, 3
    %p27 = por %p25, %p26
    %p28 = scmp.ne.s32.totalorder %s19, %s20
    %p29 = scmp.eq.s32.totalorder %s14, 0
    %p30 = por %p28, %p29
    %p31 = scmp.ne.s32.totalorder %s19, %s20
    %p32 = scmp.eq.s32.totalorder %s15, 3
    %p33 = por %p31, %p32
    %p35 = scmp.ne.s32.totalorder %s20, %s34
    %p36 = scmp.eq.s32.totalorder %s15, 0
    %p37 = por %p35, %p36
    %s39 = sadd.s32 %s38, 1
    %p42 = scmp.eq.s32.totalorder %s9, 3
    %p43 = scmp.ne.s32.totalorder %s38, %s40
    %p44 = scmp.eq.s32.totalorder %s9, 0
    %p45 = por %p43, %p44
    %p46 = scmp.ne.s32.totalorder %s38, %s40
    %p47 = scmp.eq.s32.totalorder %s14, 3
    %p48 = por %p46, %p47
    %p49 = scmp.ne.s32.totalorder %s40, %s41
    %p50 = scmp.eq.s32.totalorder %s14, 0
    %p51 = por %p49, %p50
    %p52 = scmp.ne.s32.totalorder %s40, %s41
    %p53 = scmp.eq.s32.totalorder %s15, 3
    %p54 = por %p52, %p53
    %p56 = scmp.ne.s32.totalorder %s41, %s55
    %p57 = scmp.eq.s32.totalorder %s15, 0
    %p58 = por %p56, %p57
    %s60 = sadd.s32 %s59, 1
    %p63 = scmp.eq.s32.totalorder %s9, 3
    %p64 = scmp.ne.s32.totalorder %s59, %s61
    %p65 = scmp.eq.s32.totalorder %s9, 0
    %p66 = por %p64, %p65
    %p67 = scmp.ne.s32.totalorder %s59, %s61
    %p68 = scmp.eq.s32.totalorder %s14, 3
    %p69 = por %p67, %p68
    %p70 = scmp.ne.s32.totalorder %s61, %s62
    %p71 = scmp.eq.s32.totalorder %s14, 0
    %p72 = por %p70, %p71
    %p73 = scmp.ne.s32.totalorder %s61, %s62
    %p74 = scmp.eq.s32.totalorder %s15, 3
    %p75 = por %p73, %p74
    %p77 = scmp.ne.s32.totalorder %s62, %s76
    %p78 = scmp.eq.s32.totalorder %s15, 0
    %p79 = por %p77, %p78
    %s80 = ssub.s32 %s9, %s16
    %p81 = scmp.eq.s32.totalorder %s80, 0
    %s83 = sadd.s32 %s82, 1
    %s84 = scalar_select %p81, %s82, %s83
    %p87 = pneg %p81
    %p88 = scmp.eq.s32.totalorder %s9, 3
    %p89 = por %p87, %p88
    %p90 = scmp.ne.s32.totalorder %s82, %s85
    %p91 = scmp.eq.s32.totalorder %s9, 0
    %p92 = por %p90, %p91
    %p93 = scmp.ne.s32.totalorder %s82, %s85
    %p94 = scmp.eq.s32.totalorder %s14, 3
    %p95 = por %p93, %p94
    %p96 = scmp.ne.s32.totalorder %s85, %s86
    %p97 = scmp.eq.s32.totalorder %s14, 0
    %p98 = por %p96, %p97
    %p99 = scmp.ne.s32.totalorder %s85, %s86
    %p100 = scmp.eq.s32.totalorder %s15, 3
    %p101 = por %p99, %p100
    %p103 = scmp.ne.s32.totalorder %s86, %s102
    %p104 = scmp.eq.s32.totalorder %s15, 0
    %p105 = por %p103, %p104
    %p106 = scmp.le.s32.totalorder 1, %s9
    %p107 = scmp.lt.s32.totalorder %s9, 5
    %p108 = pnand %p106, %p107
    %p109 = pneg %p108
    // Predicated region
    $region9: #{tpu_custom_call.1} parent=5 // pred_check
      _
    $region10: #{tpu_custom_call.1} parent=5 // pred_check_branch
      %111 = sbr.rel (%p108) target = $region12
    $region11: #{tpu_custom_call.1} parent=5 // pred_region
      %s112 = ssub.s32 %s9, 1
      // Predicated region
      $region13: #{tpu_custom_call.1} parent=11 // pred_check
        %p113 = pneg %p30
      $region14: #{tpu_custom_call.1} parent=11 // pred_check_branch
        %115 = sbr.rel (%p113) target = $region16
      $region15: #{tpu_custom_call.1} parent=11 // pred_region
        _
      $region16: #{tpu_custom_call.1} parent=11 // pred_fallthru
        _
      // Predicated region
      $region17: #{tpu_custom_call.1} parent=11 // pred_check
        %p116 = pneg %p51
      $region18: #{tpu_custom_call.1} parent=11 // pred_check_branch
        %118 = sbr.rel (%p116) target = $region20
      $region19: #{tpu_custom_call.1} parent=11 // pred_region
        _
      $region20: #{tpu_custom_call.1} parent=11 // pred_fallthru
        _
      // Predicated region
      $region21: #{tpu_custom_call.1} parent=11 // pred_check
        %p119 = pneg %p72
      $region22: #{tpu_custom_call.1} parent=11 // pred_check_branch
        %121 = sbr.rel (%p119) target = $region24
      $region23: #{tpu_custom_call.1} parent=11 // pred_region
        _
      $region24: #{tpu_custom_call.1} parent=11 // pred_fallthru
        _
    $region12: #{tpu_custom_call.1} parent=5 // pred_fallthru
      _
    %p122 = scmp.lt.s32.totalorder %s9, 4
    // Predicated region
    $region25: #{tpu_custom_call.1} parent=5 // pred_check
      %p123 = pneg %p122
    $region26: #{tpu_custom_call.1} parent=5 // pred_check_branch
      %125 = sbr.rel (%p123) target = $region28
    $region27: #{tpu_custom_call.1} parent=5 // pred_region
      _
    $region28: #{tpu_custom_call.1} parent=5 // pred_fallthru
      _
    %p126 = scmp.le.s32.totalorder 1, %s9
    %p127 = scmp.lt.s32.totalorder %s9, 5
    %p128 = pnand %p126, %p127
    %p129 = pneg %p128
    // Predicated region
    $region29: #{tpu_custom_call.1} parent=5 // pred_check
      _
    $region30: #{tpu_custom_call.1} parent=5 // pred_check_branch
      %131 = sbr.rel (%p128) target = $region32
    $region31: #{tpu_custom_call.1} parent=5 // pred_region
      %s132 = ssub.s32 %s9, 1
      %p133 = pneg %p30
      %p134 = pneg %p27
      %p135 = pneg %p51
      %p136 = pneg %p48
      %p137 = pneg %p72
      %p138 = pneg %p69
      %p139 = pneg %p98
      %p140 = pneg %p95
      %s141 = smul.u32 2, %s14
      %p142 = scmp.lt.s32.totalorder %s141, 7
      %s143 = scalar_select %p142, %s141, 7
      %s144 = smul.addr %s143, 8
      %s145 = scalar_lea.vmem %s3, %s144
      %s146 = smul.u32 2, %s14
      %p147 = scmp.lt.s32.totalorder %s146, 7
      %s148 = scalar_select %p147, %s146, 7
      %s149 = smul.addr %s148, 8
      %s150 = scalar_lea.vmem %s3, %s149
      %s151 = smul.u32 2, %s14
      %s152 = smul.u32 %s14, 16
      %s153 = scalar_lea.vmem %s0, %s152
      %v154 = vld [vmem:[%s153] sm:$0xff]
      %v155 = vld [vmem:[%s153 + $0x8] sm:$0xff]
      %v156 = vld [vmem:[%s1] sm:$0xff]
      %v157 = vld [vmem:[%s1 + $0x8] sm:$0xff]
      %v158 = vld [vmem:[%s1 + $0x10] sm:$0xff]
      %v159 = vld [vmem:[%s1 + $0x18] sm:$0xff]
      %v160 = vlaneseq
      %v161 = vshrl.u32 %v160, 7
      %v162 = vadd.s32 %v161, 8
      %v163 = vstv %s152
      %v164 = vadd.s32 %v163, %v161
      %v165 = vadd.s32 %v163, %v162
      %v166 = vlaneseq
      %v167 = vand.u32 %v166, 127
      %vm168 = vcmp.eq.s32.totalorder %v167, %v164
      %vm169 = vcmp.eq.s32.totalorder %v167, %v165
      %v170 = vld [vmem:[%s2] sm:$0x1]
      %v172 = vlaneseq
      %v173 = vshrl.u32 %v172, 7
      %v174 = vsub.s32 0, %v173
      %v175 = vrot.slane %v170, %v174
      %vm177 = vcmask 261120
      %v179 = vsel %vm177, %v154, 0
      %v182 = vsel %vm177, %v155, 0
      %184 = vmatprep.subr.mxu0 0.0
      %185 = vmatpush1.msra.mxu0 0.0
      %186 = vmatprep.subr.mxu0 0.0
      %187 = vmatpush1.msra.mxu0 0.0
      %188 = vmatprep.subr.mxu0 0.0
      %189 = vmatpush1.msra.mxu0 0.0
      %190 = vmatprep.subr.mxu0 0.0
      %191 = vmatpush1.msra.mxu0 0.0
      %192 = vmatprep.subr.mxu0 0.0
      %193 = vmatpush1.msra.mxu0 0.0
      %194 = vmatprep.subr.mxu0 0.0
      %195 = vmatpush1.msra.mxu0 0.0
      %196 = vmatprep.subr.mxu0 0.0
      %197 = vmatpush1.msra.mxu0 0.0
      %198 = vmatprep.subr.mxu0 0.0
      %199 = vmatpush1.msra.mxu0 0.0
      %200 = vmatprep.subr.mxu0 0.0
      %201 = vmatpush1.msra.mxu0 0.0
      %202 = vmatprep.subr.mxu0 0.0
      %203 = vmatpush1.msra.mxu0 0.0
      %204 = vmatprep.subr.mxu0 0.0
      %205 = vmatpush1.msra.mxu0 0.0
      %206 = vmatprep.subr.mxu0 0.0
      %207 = vmatpush1.msra.mxu0 0.0
      %208 = vmatprep.subr.mxu0 0.0
      %209 = vmatpush1.msra.mxu0 %v159
      %210 = vmatprep.subr.mxu0 0.0
      %211 = vmatpush1.msra.mxu0 %v158
      %212 = vmatprep.subr.mxu0 0.0
      %213 = vmatpush1.msra.mxu0 %v157
      %214 = vmatprep.subr.mxu0 0.0
      %215 = vmatpush1.msra.mxu0 %v156
      %216 = vmatprep.subr.mxu0 0.0
      %217 = vmatpush2.msra.mxu0 0.0
      %218 = vmatprep.subr.mxu0 0.0
      %219 = vmatpush2.msra.mxu0 0.0
      %220 = vmatprep.subr.mxu0 0.0
      %221 = vmatpush2.msra.mxu0 0.0
      %222 = vmatprep.subr.mxu0 0.0
      %223 = vmatpush2.msra.mxu0 0.0
      %224 = vmatprep.subr.mxu0 0.0
      %225 = vmatpush2.msra.mxu0 0.0
      %226 = vmatprep.subr.mxu0 0.0
      %227 = vmatpush2.msra.mxu0 0.0
      %228 = vmatprep.subr.mxu0 0.0
      %229 = vmatpush2.msra.mxu0 0.0
      %230 = vmatprep.subr.mxu0 0.0
      %231 = vmatpush2.msra.mxu0 0.0
      %232 = vmatprep.subr.mxu0 0.0
      %233 = vmatpush2.msra.mxu0 0.0
      %234 = vmatprep.subr.mxu0 0.0
      %235 = vmatpush2.msra.mxu0 0.0
      %236 = vmatprep.subr.mxu0 0.0
      %237 = vmatpush2.msra.mxu0 0.0
      %238 = vmatprep.subr.mxu0 0.0
      %239 = vmatpush2.msra.mxu0 0.0
      %240 = vmatprep.subr.mxu0 0.0
      %241 = vmatpush2.msra.mxu0 0.0
      %242 = vmatprep.subr.mxu0 0.0
      %243 = vmatpush2.msra.mxu0 0.0
      %244 = vmatprep.subr.mxu0 0.0
      %245 = vmatpush2.msra.mxu0 0.0
      %246 = vmatprep.subr.mxu0 0.0
      %247 = vmatpush2.msra.mxu0 0.0
      %248 = vmatprep.mubr.f32.mxu0 0.0
      %249 = vmatmul.mubr.f32.gmra.mxu0 %v179
      %v250 = vpop.f32.mrf.mxu0
      %v251 = vadd.f32 %v175, %v250
      %v252 = vpop.f32.mrf.mxu0
      %253 = vmatprep.mubr.f32.mxu0 0.0
      %254 = vmatmul.mubr.f32.gmra.mxu0 %v182
      %v255 = vpop.f32.mrf.mxu0
      %v256 = vadd.f32 %v175, %v255
      %v257 = vpop.f32.mrf.mxu0
      %258 = vdwg.mxu0
      %v259 = vsel %vm168, -1e+30, %v251
      %v260 = vsel %vm169, -1e+30, %v256
      %vm261 = vcmask 523264
      %v262 = vsel %vm261, %v259, -inf
      %263 = vmax.xlane.f32.xlu0 %v262
      %v264 = vpop.xlane.xlu0 %263
      %v265 = vsel %vm261, %v260, -inf
      %266 = vmax.xlane.f32.xlu0 %v265
      %v267 = vpop.xlane.xlu0 %266
      %v268 = vsub.f32 %v259, %v264
      %v269 = vsub.f32 %v260, %v267
      %v270 = vmul.f32 %v268, 1.442695
      %v271 = vpow.pop %v270
      %v272 = vmul.f32 %v269, 1.442695
      %v273 = vpow.pop %v272
      %v274 = vsel %vm261, %v271, 0.0
      %275 = vadd.xlane.f32.xlu0 %v274
      %v276 = vpop.xlane.xlu0 %275
      %v277 = vsel %vm261, %v273, 0.0
      %278 = vadd.xlane.f32.xlu0 %v277
      %v279 = vpop.xlane.xlu0 %278
      %v280 = vlog2.pop %v276
      %v281 = vmul.f32 %v280, 0.6931472
      %v282 = vlog2.pop %v279
      %v283 = vmul.f32 %v282, 0.6931472
      %v284 = vadd.f32 %v264, %v281
      %v285 = vadd.f32 %v267, %v283
      %p286 = scmp.lt.s32.totalorder %s152, 32
      %s287 = sadd.s32 %s152, 32
      %s288 = ssub.s32 %s152, 32
      %s289 = scalar_select %p286, %s287, %s288
      %s290 = scalar_lea.vmem %s0, %s289
      %v291 = vld [vmem:[%s290] sm:$0xff]
      %v292 = vld [vmem:[%s290 + $0x8] sm:$0xff]
      %v293 = vmul.f32 %v154, %v291
      %v294 = vmul.f32 %v155, %v292
      %v295 = vsel %vm177, %v293, 0.0
      %296 = vadd.xlane.f32.xlu0 %v295
      %v297 = vpop.xlane.xlu0 %296
      %v298 = vsel %vm177, %v294, 0.0
      %299 = vadd.xlane.f32.xlu0 %v298
      %v300 = vpop.xlane.xlu0 %299
      %s301 = scalar_select %p286, 0, 32
      %v302 = vstv %s301
      %v303 = vsub.s32 %v164, %v302
      %v304 = vsub.s32 %v165, %v302
      %vm305 = vcmp.lt.s32.totalorder %v303, 21
      %vm306 = vcmp.lt.s32.totalorder %v304, 21
      %v307 = vsub.f32 %v284, %v297
      %v308 = vsub.f32 %v285, %v300
      %v309 = vsel %vm305, %v307, 0.0
      %v310 = vsel %vm306, %v308, 0.0
      %vm311 = vcmask 7168
      %312 = vst.msk [vmem:[%s150] sm:$0xff] %vm311, %v309
      %313 = vst.msk [vmem:[%s150 + $0x8] sm:$0xff] %vm311, %v310
      %s314 = smul.u32 2, %s14
      %p315 = scmp.lt.s32.totalorder %s314, 7
      %s316 = scalar_select %p315, %s314, 7
      %s317 = smul.addr %s316, 8
      %s318 = scalar_lea.vmem %s3, %s317
      // Predicated region
      $region33: #{tpu_custom_call.1} parent=31 // pred_check
        %p319 = pneg %p95
      $region34: #{tpu_custom_call.1} parent=31 // pred_check_branch
        %321 = sbr.rel (%p319) target = $region36
      $region35: #{tpu_custom_call.1} parent=31 // pred_region
        %s322 = smul.u32 2, %s14
      $region36: #{tpu_custom_call.1} parent=31 // pred_fallthru
        _
    $region32: #{tpu_custom_call.1} parent=5 // pred_fallthru
      _
    %p323 = scmp.le.s32.totalorder 2, %s9
    // Predicated region
    $region37: #{tpu_custom_call.1} parent=5 // pred_check
      %p324 = pneg %p323
    $region38: #{tpu_custom_call.1} parent=5 // pred_check_branch
      %326 = sbr.rel (%p324) target = $region40
    $region39: #{tpu_custom_call.1} parent=5 // pred_region
      %s327 = ssub.s32 %s9, 2
      // Predicated region
      $region41: #{tpu_custom_call.1} parent=39 // pred_check
        %p328 = pneg %p101
      $region42: #{tpu_custom_call.1} parent=39 // pred_check_branch
        %330 = sbr.rel (%p328) target = $region44
      $region43: #{tpu_custom_call.1} parent=39 // pred_region
        %s331 = smul.u32 2, %s15
        %p332 = scmp.lt.s32.totalorder %s331, 7
        %s333 = scalar_select %p332, %s331, 7
        %s334 = smul.addr %s333, 8
        %s335 = scalar_lea.vmem %s3, %s334
      $region44: #{tpu_custom_call.1} parent=39 // pred_fallthru
        _
    $region40: #{tpu_custom_call.1} parent=5 // pred_fallthru
      _
  $region6: #{tpu_custom_call.1} parent=0 // loop_footer
    %s13 = sadd.s32 1, %s9
  $region7: #{tpu_custom_call.1} parent=0 // loop_footer_branch
    %8 = sbr.rel target = $region3
  $region8: #{tpu_custom_call.1} parent=0 // loop_exit
    _

</llo_original>
